<compile_context>
chip_gen: v7x
topology: tpu7x:2x2x1
jax: 0.10.0
libtpu: 0.0.40
codegen_flags: <defaults>
</compile_context>

<pallas_src>
import functools

import numpy as np
import jax
import jax.numpy as jnp
from jax.experimental import pallas as pl
from jax.experimental.pallas import tpu as pltpu

LEAKY_ALPHA = 0.1
_TM = 256                        # M (pixel) row tile — sweep per generation
_VMEM_LIMIT = 48 * 1024 * 1024   # raised scoped-VMEM limit; safe on v5e/v6e/v7x
COMPUTE_DTYPE = jnp.float32      # set to jnp.bfloat16 on v6e/v7x for ~2x MXU


def _round_up(x, m):
    return ((x + m - 1) // m) * m


# ---------------------------------------------------------------------------
# Pallas kernel: fused  out = (leaky_relu)(x @ w + b)
# ---------------------------------------------------------------------------
def _matmul_bias_act_kernel(x_ref, w_ref, b_ref, o_ref, *, act, alpha):
    acc = jnp.dot(x_ref[...], w_ref[...], preferred_element_type=jnp.float32)
    acc = acc + b_ref[...]                     # (1, N) broadcasts over rows
    if act:
        acc = jnp.where(acc >= 0, acc, alpha * acc)
    o_ref[...] = acc.astype(o_ref.dtype)


def _matmul_bias_act(x, w, b, *, act, alpha=LEAKY_ALPHA, tm=_TM):
    """x:(M,K) @ w:(K,N) + b:(N,), optional fused LeakyReLU. Tiled over M."""
    m, k = x.shape
    n = w.shape[1]
    tm = min(tm, _round_up(m, 8))              # small problems -> single tile
    mp = _round_up(m, tm)
    if mp != m:                                # only pads when M % tm != 0
        x = jnp.pad(x, ((0, mp - m), (0, 0)))
    kern = functools.partial(_matmul_bias_act_kernel, act=act, alpha=alpha)
    out = pl.pallas_call(
        kern,
        out_shape=jax.ShapeDtypeStruct((mp, n), jnp.float32),
        grid=(mp // tm,),
        in_specs=[
            pl.BlockSpec((tm, k), lambda i: (i, 0)),
            pl.BlockSpec((k, n), lambda i: (0, 0)),
            pl.BlockSpec((1, n), lambda i: (0, 0)),
        ],
        out_specs=pl.BlockSpec((tm, n), lambda i: (i, 0)),
        compiler_params=pltpu.CompilerParams(
            dimension_semantics=("parallel",),
            vmem_limit_bytes=_VMEM_LIMIT,
        ),
    )(x.astype(COMPUTE_DTYPE), w.astype(COMPUTE_DTYPE),
      b.reshape(1, n).astype(jnp.float32))
    return out[:m] if mp != m else out


# ---------------------------------------------------------------------------
# Convolutions built on the fused matmul kernel
# ---------------------------------------------------------------------------
def _im2col(xp, kh, kw, ho, wo):
    """xp: NHWC, already padded.  Returns (N*ho*wo, kh*kw*C).

    The kh*kw shifted views are concatenated along the channel (lane) axis, so
    no transpose ever hits HBM; K ordering matches HWIO.reshape(kh*kw*C, Cout).
    """
    taps = []
    for i in range(kh):
        for j in range(kw):
            taps.append(xp[:, i:i + ho, j:j + wo, :])
    cols = jnp.concatenate(taps, axis=-1)
    return cols.reshape(-1, cols.shape[-1])


def _conv2d_3x3_s1(x, w_hwio, b, *, act, pad=1):
    """3x3 stride-1 conv on NHWC x, weight HWIO, fused bias (+ LeakyReLU)."""
    n, h, wd, cin = x.shape
    kh, kw, _, cout = w_hwio.shape
    xp = jnp.pad(x, ((0, 0), (pad, pad), (pad, pad), (0, 0)))
    ho = h + 2 * pad - kh + 1
    wo = wd + 2 * pad - kw + 1
    cols = _im2col(xp, kh, kw, ho, wo)
    out = _matmul_bias_act(cols, w_hwio.reshape(kh * kw * cin, cout), b, act=act)
    return out.reshape(n, ho, wo, cout)


def _conv_transpose2d_3x3_s2(x, w_iohw, b, *, act):
    """ConvTranspose2d(k=3, stride=2, padding=1, output_padding=1) on NHWC x.

    Equivalent form: zero-dilate by 2, pad (1 before / 2 after), then stride-1
    3x3 conv with the spatially-flipped, in/out-swapped kernel.
    # TODO(synk): the dilated input is 3/4 zeros; a 4-phase sub-convolution
    # decomposition would cut MXU work ~4x for this layer.
    """
    n, h, wd, cin = x.shape
    cout = w_iohw.shape[1]
    s, k, p, op = 2, 3, 1, 1
    hd, wdd = (h - 1) * s + 1, (wd - 1) * s + 1
    xd = jnp.zeros((n, hd, wdd, cin), x.dtype).at[:, ::s, ::s, :].set(x)
    lo, hi = k - 1 - p, k - 1 - p + op                       # 1, 2
    xp = jnp.pad(xd, ((0, 0), (lo, hi), (lo, hi), (0, 0)))
    w_hwio = jnp.transpose(w_iohw[:, :, ::-1, ::-1], (2, 3, 0, 1))
    ho, wo = h * s, wd * s
    cols = _im2col(xp, k, k, ho, wo)
    out = _matmul_bias_act(cols, w_hwio.reshape(k * k * cin, cout), b, act=act)
    return out.reshape(n, ho, wo, cout)


def _upsample_nearest_x2(x):
    return jnp.repeat(jnp.repeat(x, 2, axis=1), 2, axis=2)


# ---------------------------------------------------------------------------
# DecoderBlock forward
# ---------------------------------------------------------------------------
def decoder_block_forward(params, x_nchw, skip_nchw=None, *, deconv_type="transpose"):
    x = jnp.transpose(x_nchw, (0, 2, 3, 1)).astype(jnp.float32)          # NHWC
    if deconv_type == "transpose":
        d = _conv_transpose2d_3x3_s2(x, params["deconv_w"], params["deconv_b"],
                                     act=True)
    elif deconv_type == "up":
        w_hwio = jnp.transpose(params["deconv_w"], (2, 3, 1, 0))         # OIHW->HWIO
        d = _conv2d_3x3_s1(_upsample_nearest_x2(x), w_hwio,
                           params["deconv_b"], act=True)
    else:
        raise ValueError(deconv_type)

    if skip_nchw is not None:
        skip = jnp.transpose(skip_nchw, (0, 2, 3, 1)).astype(jnp.float32)
        cat = jnp.concatenate([d, skip], axis=-1)                        # [deconv, skip]
    else:
        cat = d

    w_hwio = jnp.transpose(params["conv_w"], (2, 3, 1, 0))               # OIHW->HWIO
    out = _conv2d_3x3_s1(cat, w_hwio, params["conv_b"], act=False)       # no activation
    return jnp.transpose(out, (0, 3, 1, 2))                              # back to NCHW


def init_decoder_block_params(key, in_channels, skip_channels, out_channels,
                              deconv_type="transpose", scale=0.05):
    k1, k2, k3, k4 = jax.random.split(key, 4)
    if deconv_type == "transpose":     # ConvTranspose2d weight: (Cin, Cout, 3, 3)
        deconv_w = scale * jax.random.normal(k1, (in_channels, out_channels, 3, 3),
                                             jnp.float32)
    else:                              # Conv2d weight: (Cout, Cin, 3, 3)
        deconv_w = scale * jax.random.normal(k1, (out_channels, in_channels, 3, 3),
                                             jnp.float32)
    deconv_b = scale * jax.random.normal(k2, (out_channels,), jnp.float32)
    concat_channels = skip_channels + out_channels
    conv_w = scale * jax.random.normal(k3, (out_channels, concat_channels, 3, 3),
                                       jnp.float32)
    conv_b = scale * jax.random.normal(k4, (out_channels,), jnp.float32)
    return dict(deconv_w=deconv_w, deconv_b=deconv_b, conv_w=conv_w, conv_b=conv_b)


# ---------------------------------------------------------------------------
# Pure NumPy reference (PyTorch semantics) for validation
# ---------------------------------------------------------------------------
def _np_leaky(x, a=LEAKY_ALPHA):
    return np.where(x >= 0, x, a * x)


def _np_conv2d(x, w, b, stride=1, pad=1):
    # x: (N, Cin, H, W), w: (Cout, Cin, K, K)
    N, Ci, H, W = x.shape
    Co, _, K, _ = w.shape
    xp = np.pad(x, ((0, 0), (0, 0), (pad, pad), (pad, pad)))
    Ho = (H + 2 * pad - K) // stride + 1
    Wo = (W + 2 * pad - K) // stride + 1
    out = np.zeros((N, Co, Ho, Wo), np.float32)
    for kh in range(K):
        for kw in range(K):
            patch = xp[:, :, kh:kh + stride * (Ho - 1) + 1:stride,
                       kw:kw + stride * (Wo - 1) + 1:stride]
            out += np.einsum("nihw,oi->nohw", patch, w[:, :, kh, kw])
    return out + b[None, :, None, None]


def _np_conv_transpose2d(x, w, b, stride=2, pad=1, out_pad=1):
    # x: (N, Cin, H, W), w: (Cin, Cout, K, K)
    N, Ci, H, W = x.shape
    _, Co, K, _ = w.shape
    Hf = (H - 1) * stride + K
    Wf = (W - 1) * stride + K
    y = np.zeros((N, Co, Hf, Wf), np.float32)
    for kh in range(K):
        for kw in range(K):
            contrib = np.einsum("nihw,io->nohw", x, w[:, :, kh, kw])
            y[:, :, kh:kh + (H - 1) * stride + 1:stride,
              kw:kw + (W - 1) * stride + 1:stride] += contrib
    Ho = (H - 1) * stride - 2 * pad + K + out_pad
    Wo = (W - 1) * stride - 2 * pad + K + out_pad
    return y[:, :, pad:pad + Ho, pad:pad + Wo] + b[None, :, None, None]


# ---------------------------------------------------------------------------
if __name__ == "__main__":
    key = jax.random.PRNGKey(0)
    kp, kp2, kx, ks = jax.random.split(key, 4)

    N, Cin, H, W = 2, 8, 16, 16
    skip_c, Cout = 4, 8
    x = jax.random.normal(kx, (N, Cin, H, W), jnp.float32)
    skip = jax.random.normal(ks, (N, skip_c, 2 * H, 2 * W), jnp.float32)

    # ---- deconv_type='transpose' (module default) -------------------------
    params_t = init_decoder_block_params(kp, Cin, skip_c, Cout, "transpose")
    fwd_t = jax.jit(functools.partial(decoder_block_forward, deconv_type="transpose"))
    out_t = fwd_t(params_t, x, skip)
    jax.block_until_ready(out_t)
    assert out_t.shape == (N, Cout, 2 * H, 2 * W), out_t.shape

    xn, sn = np.asarray(x), np.asarray(skip)
    pt = {k: np.asarray(v) for k, v in params_t.items()}
    d_ref = _np_leaky(_np_conv_transpose2d(xn, pt["deconv_w"], pt["deconv_b"]))
    ref_t = _np_conv2d(np.concatenate([d_ref, sn], axis=1), pt["conv_w"], pt["conv_b"])
    np.testing.assert_allclose(np.asarray(out_t), ref_t, rtol=2e-2, atol=2e-2)

    # ---- deconv_type='up' --------------------------------------------------
    params_u = init_decoder_block_params(kp2, Cin, skip_c, Cout, "up")
    fwd_u = jax.jit(functools.partial(decoder_block_forward, deconv_type="up"))
    out_u = fwd_u(params_u, x, skip)
    jax.block_until_ready(out_u)
    assert out_u.shape == (N, Cout, 2 * H, 2 * W), out_u.shape

    pu = {k: np.asarray(v) for k, v in params_u.items()}
    x_up = np.repeat(np.repeat(xn, 2, axis=2), 2, axis=3)
    d_ref_u = _np_leaky(_np_conv2d(x_up, pu["deconv_w"], pu["deconv_b"]))
    ref_u = _np_conv2d(np.concatenate([d_ref_u, sn], axis=1), pu["conv_w"], pu["conv_b"])
    np.testing.assert_allclose(np.asarray(out_u), ref_u, rtol=2e-2, atol=2e-2)

    print("KERNEL_OK")
</pallas_src>

<mosaic_0001>
module attributes {stable_mosaic.version = 11 : i64} {
  func.func @_matmul_bias_act_kernel(%arg0: i32, %arg1: memref<256x72xf32, #tpu.memory_space<vmem>>, %arg2: memref<72x8xf32, #tpu.memory_space<vmem>>, %arg3: memref<1x8xf32, #tpu.memory_space<vmem>>, %arg4: memref<256x8xf32, #tpu.memory_space<vmem>>) attributes {dimension_semantics = [#tpu.dimension_semantics<parallel>], iteration_bounds = array<i64: 8>, scalar_prefetch = 0 : i64, scratch_operands = 0 : i64, tpu.core_type = #tpu.core_type<tc>, window_params = [{transform_indices = @transform_0, window_bounds = array<i64: 256, 72>}, {pipeline_mode = #tpu.pipeline_mode<synchronous>, transform_indices = @transform_1, window_bounds = array<i64: 72, 8>}, {pipeline_mode = #tpu.pipeline_mode<synchronous>, transform_indices = @transform_2, window_bounds = array<i64: 1, 8>}, {transform_indices = @transform_3, window_bounds = array<i64: 256, 8>}]} {
    %c0 = arith.constant 0 : index
    %c0_0 = arith.constant 0 : index
    %0 = vector.load %arg1[%c0, %c0_0] : memref<256x72xf32, #tpu.memory_space<vmem>>, vector<256x72xf32>
    %c0_1 = arith.constant 0 : index
    %c0_2 = arith.constant 0 : index
    %1 = vector.load %arg2[%c0_1, %c0_2] : memref<72x8xf32, #tpu.memory_space<vmem>>, vector<72x8xf32>
    %cst = arith.constant dense<0.000000e+00> : vector<256x8xf32>
    %2 = tpu.matmul %0, %1, %cst {dimension_numbers = #tpu.dot_dimension_numbers<[1], [0], [0], [1], [0, 0, 1, 1], [], []>} : vector<256x72xf32>, vector<72x8xf32>, vector<256x8xf32> -> vector<256x8xf32>
    %c0_3 = arith.constant 0 : index
    %c0_4 = arith.constant 0 : index
    %3 = vector.load %arg3[%c0_3, %c0_4] : memref<1x8xf32, #tpu.memory_space<vmem>>, vector<1x8xf32>
    %4 = vector.broadcast %3 : vector<1x8xf32> to vector<256x8xf32>
    %5 = arith.addf %2, %4 : vector<256x8xf32>
    %cst_5 = arith.constant 0.000000e+00 : f32
    %6 = vector.broadcast %cst_5 : f32 to vector<256x8xf32>
    %7 = arith.cmpf oge, %5, %6 : vector<256x8xf32>
    %cst_6 = arith.constant 1.000000e-01 : f32
    %8 = vector.broadcast %cst_6 : f32 to vector<256x8xf32>
    %9 = arith.mulf %8, %5 : vector<256x8xf32>
    %10 = arith.select %7, %5, %9 : vector<256x8xi1>, vector<256x8xf32>
    %c0_7 = arith.constant 0 : index
    %c0_8 = arith.constant 0 : index
    %11 = vector.load %arg4[%c0_7, %c0_8] : memref<256x8xf32, #tpu.memory_space<vmem>>, vector<256x8xf32>
    tpu.vector_store %arg4[%c0_7, %c0_8], %10 {strides = array<i32>} : memref<256x8xf32, #tpu.memory_space<vmem>>, vector<256x8xf32>,
    return
  }
  func.func @transform_0(%arg0: i32) -> (i32, i32) {
    %c0_i32 = arith.constant 0 : i32
    %c0_i32_0 = arith.constant 0 : i32
    return %arg0, %c0_i32 : i32, i32
  }
  func.func @transform_1(%arg0: i32) -> (i32, i32) {
    %c0_i32 = arith.constant 0 : i32
    %c0_i32_0 = arith.constant 0 : i32
    %c0_i32_1 = arith.constant 0 : i32
    return %c0_i32, %c0_i32_0 : i32, i32
  }
  func.func @transform_2(%arg0: i32) -> (i32, i32) {
    %c0_i32 = arith.constant 0 : i32
    %c0_i32_0 = arith.constant 0 : i32
    %c0_i32_1 = arith.constant 0 : i32
    return %c0_i32, %c0_i32_0 : i32, i32
  }
  func.func @transform_3(%arg0: i32) -> (i32, i32) {
    %c0_i32 = arith.constant 0 : i32
    %c0_i32_0 = arith.constant 0 : i32
    return %arg0, %c0_i32 : i32, i32
  }
}

module attributes {stable_mosaic.version = 11 : i64} {
  func.func @_matmul_bias_act_kernel(%arg0: i32, %arg1: memref<256x108xf32, #tpu.memory_space<vmem>>, %arg2: memref<108x8xf32, #tpu.memory_space<vmem>>, %arg3: memref<1x8xf32, #tpu.memory_space<vmem>>, %arg4: memref<256x8xf32, #tpu.memory_space<vmem>>) attributes {dimension_semantics = [#tpu.dimension_semantics<parallel>], iteration_bounds = array<i64: 8>, scalar_prefetch = 0 : i64, scratch_operands = 0 : i64, tpu.core_type = #tpu.core_type<tc>, window_params = [{transform_indices = @transform_0, window_bounds = array<i64: 256, 108>}, {pipeline_mode = #tpu.pipeline_mode<synchronous>, transform_indices = @transform_1, window_bounds = array<i64: 108, 8>}, {pipeline_mode = #tpu.pipeline_mode<synchronous>, transform_indices = @transform_2, window_bounds = array<i64: 1, 8>}, {transform_indices = @transform_3, window_bounds = array<i64: 256, 8>}]} {
    %c0 = arith.constant 0 : index
    %c0_0 = arith.constant 0 : index
    %0 = vector.load %arg1[%c0, %c0_0] : memref<256x108xf32, #tpu.memory_space<vmem>>, vector<256x108xf32>
    %c0_1 = arith.constant 0 : index
    %c0_2 = arith.constant 0 : index
    %1 = vector.load %arg2[%c0_1, %c0_2] : memref<108x8xf32, #tpu.memory_space<vmem>>, vector<108x8xf32>
    %cst = arith.constant dense<0.000000e+00> : vector<256x8xf32>
    %2 = tpu.matmul %0, %1, %cst {dimension_numbers = #tpu.dot_dimension_numbers<[1], [0], [0], [1], [0, 0, 1, 1], [], []>} : vector<256x108xf32>, vector<108x8xf32>, vector<256x8xf32> -> vector<256x8xf32>
    %c0_3 = arith.constant 0 : index
    %c0_4 = arith.constant 0 : index
    %3 = vector.load %arg3[%c0_3, %c0_4] : memref<1x8xf32, #tpu.memory_space<vmem>>, vector<1x8xf32>
    %4 = vector.broadcast %3 : vector<1x8xf32> to vector<256x8xf32>
    %5 = arith.addf %2, %4 : vector<256x8xf32>
    %c0_5 = arith.constant 0 : index
    %c0_6 = arith.constant 0 : index
    %6 = vector.load %arg4[%c0_5, %c0_6] : memref<256x8xf32, #tpu.memory_space<vmem>>, vector<256x8xf32>
    tpu.vector_store %arg4[%c0_5, %c0_6], %5 {strides = array<i32>} : memref<256x8xf32, #tpu.memory_space<vmem>>, vector<256x8xf32>,
    return
  }
  func.func @transform_0(%arg0: i32) -> (i32, i32) {
    %c0_i32 = arith.constant 0 : i32
    %c0_i32_0 = arith.constant 0 : i32
    return %arg0, %c0_i32 : i32, i32
  }
  func.func @transform_1(%arg0: i32) -> (i32, i32) {
    %c0_i32 = arith.constant 0 : i32
    %c0_i32_0 = arith.constant 0 : i32
    %c0_i32_1 = arith.constant 0 : i32
    return %c0_i32, %c0_i32_0 : i32, i32
  }
  func.func @transform_2(%arg0: i32) -> (i32, i32) {
    %c0_i32 = arith.constant 0 : i32
    %c0_i32_0 = arith.constant 0 : i32
    %c0_i32_1 = arith.constant 0 : i32
    return %c0_i32, %c0_i32_0 : i32, i32
  }
  func.func @transform_3(%arg0: i32) -> (i32, i32) {
    %c0_i32 = arith.constant 0 : i32
    %c0_i32_0 = arith.constant 0 : i32
    return %arg0, %c0_i32 : i32, i32
  }
}

</mosaic_0001>

<llo_original>
// kernel: decoder_block_forward.2
$region0: #{decoder_block_forward.2}
  #allocation0 [shape = 'u32[]', space=smem, size = 0x4, offset = 0x4, fixed_abs, tag = 'smem constant byte address 0x4 - core index']
  #allocation1 [shape = 'u32[144,128]{1,0:T(1,128)}', space=vmem, size = 0x12000, scoped, tag = 'internal scratch']
  %s0 = inlined_call_operand.vmem [shape: f32[2048,72], index: 0, kind: input, shape index: {}]
  %s1 = inlined_call_operand.vmem [shape: f32[72,8], index: 1, kind: input, shape index: {}]
  %s2 = inlined_call_operand.vmem [shape: f32[1,8], index: 2, kind: input, shape index: {}]
  %s3 = inlined_call_operand.vmem [shape: f32[2048,8], index: 3, kind: output, shape index: {}]
  %s4 = sld [smem:[#allocation0]]
  $region45: #{decoder_block_forward.2} parent=0
    _
  %s6 = ssub.s32 1, %s4
  %s7 = scalar_select 0, %s6, %s4
  loop: start=0, step=1, limit=10
  $region2: #{decoder_block_forward.2} parent=0 // loop_pre_header
    _
  $region3: #{decoder_block_forward.2} parent=0 // loop_header
    %s9 = sphi 0, %s13
    %p10 = scmp.ge.s32.totalorder %s9, 10
    %s19 = sphi 0, %s21
    %s22 = sphi 0, %s19
    %s23 = sphi 0, %s22
    %s39 = sphi 0, %s23
    %s43 = sphi 0, %s43
    %s45 = sphi 0, %s43
    %s46 = sphi 0, %s45
    %s60 = sphi 0, %s46
    %s64 = sphi 0, %s64
    %s66 = sphi 0, %s64
    %s67 = sphi 0, %s66
    %s81 = sphi 0, %s67
    %s87 = sphi 0, %s89
    %s90 = sphi 0, %s87
    %s91 = sphi 0, %s90
    %s107 = sphi 0, %s91
  $region4: #{decoder_block_forward.2} parent=0 // loop_header_branch
    %12 = sbr.rel (%p10) target = $region8
  $region5: #{decoder_block_forward.2} parent=0 // loop_body
    %s14 = ssub.s32 %s9, 1
    %s15 = ssub.s32 %s9, 2
    %s16 = sadd.s32 %s9, 1
    %s17 = ssub.s32 %s9, %s16
    %p18 = scmp.eq.s32.totalorder %s17, 0
    %s20 = sadd.s32 %s19, 1
    %s21 = scalar_select %p18, %s19, %s20
    %p24 = pneg %p18
    %p25 = scmp.eq.s32.totalorder %s9, 7
    %p26 = por %p24, %p25
    %p27 = scmp.ne.s32.totalorder %s19, %s22
    %p28 = scmp.eq.s32.totalorder %s9, 0
    %p29 = por %p27, %p28
    %p30 = scmp.ne.s32.totalorder %s19, %s22
    %p31 = scmp.eq.s32.totalorder %s14, 7
    %p32 = por %p30, %p31
    %p33 = scmp.ne.s32.totalorder %s22, %s23
    %p34 = scmp.eq.s32.totalorder %s14, 0
    %p35 = por %p33, %p34
    %p36 = scmp.ne.s32.totalorder %s22, %s23
    %p37 = scmp.eq.s32.totalorder %s15, 7
    %p38 = por %p36, %p37
    %p40 = scmp.ne.s32.totalorder %s23, %s39
    %p41 = scmp.eq.s32.totalorder %s15, 0
    %p42 = por %p40, %p41
    %s44 = sadd.s32 %s43, 1
    %p47 = scmp.eq.s32.totalorder %s9, 7
    %p48 = scmp.ne.s32.totalorder %s43, %s45
    %p49 = scmp.eq.s32.totalorder %s9, 0
    %p50 = por %p48, %p49
    %p51 = scmp.ne.s32.totalorder %s43, %s45
    %p52 = scmp.eq.s32.totalorder %s14, 7
    %p53 = por %p51, %p52
    %p54 = scmp.ne.s32.totalorder %s45, %s46
    %p55 = scmp.eq.s32.totalorder %s14, 0
    %p56 = por %p54, %p55
    %p57 = scmp.ne.s32.totalorder %s45, %s46
    %p58 = scmp.eq.s32.totalorder %s15, 7
    %p59 = por %p57, %p58
    %p61 = scmp.ne.s32.totalorder %s46, %s60
    %p62 = scmp.eq.s32.totalorder %s15, 0
    %p63 = por %p61, %p62
    %s65 = sadd.s32 %s64, 1
    %p68 = scmp.eq.s32.totalorder %s9, 7
    %p69 = scmp.ne.s32.totalorder %s64, %s66
    %p70 = scmp.eq.s32.totalorder %s9, 0
    %p71 = por %p69, %p70
    %p72 = scmp.ne.s32.totalorder %s64, %s66
    %p73 = scmp.eq.s32.totalorder %s14, 7
    %p74 = por %p72, %p73
    %p75 = scmp.ne.s32.totalorder %s66, %s67
    %p76 = scmp.eq.s32.totalorder %s14, 0
    %p77 = por %p75, %p76
    %p78 = scmp.ne.s32.totalorder %s66, %s67
    %p79 = scmp.eq.s32.totalorder %s15, 7
    %p80 = por %p78, %p79
    %p82 = scmp.ne.s32.totalorder %s67, %s81
    %p83 = scmp.eq.s32.totalorder %s15, 0
    %p84 = por %p82, %p83
    %s85 = ssub.s32 %s9, %s16
    %p86 = scmp.eq.s32.totalorder %s85, 0
    %s88 = sadd.s32 %s87, 1
    %s89 = scalar_select %p86, %s87, %s88
    %p92 = pneg %p86
    %p93 = scmp.eq.s32.totalorder %s9, 7
    %p94 = por %p92, %p93
    %p95 = scmp.ne.s32.totalorder %s87, %s90
    %p96 = scmp.eq.s32.totalorder %s9, 0
    %p97 = por %p95, %p96
    %p98 = scmp.ne.s32.totalorder %s87, %s90
    %p99 = scmp.eq.s32.totalorder %s14, 7
    %p100 = por %p98, %p99
    %p101 = scmp.ne.s32.totalorder %s90, %s91
    %p102 = scmp.eq.s32.totalorder %s14, 0
    %p103 = por %p101, %p102
    %p104 = scmp.ne.s32.totalorder %s90, %s91
    %p105 = scmp.eq.s32.totalorder %s15, 7
    %p106 = por %p104, %p105
    %p108 = scmp.ne.s32.totalorder %s91, %s107
    %p109 = scmp.eq.s32.totalorder %s15, 0
    %p110 = por %p108, %p109
    %p111 = scmp.le.s32.totalorder 1, %s9
    %p112 = scmp.lt.s32.totalorder %s9, 9
    %p113 = pnand %p111, %p112
    %p114 = pneg %p113
    // Predicated region
    $region9: #{decoder_block_forward.2} parent=5 // pred_check
      _
    $region10: #{decoder_block_forward.2} parent=5 // pred_check_branch
      %116 = sbr.rel (%p113) target = $region12
    $region11: #{decoder_block_forward.2} parent=5 // pred_region
      %s117 = ssub.s32 %s9, 1
      // Predicated region
      $region13: #{decoder_block_forward.2} parent=11 // pred_check
        %p118 = pneg %p56
      $region14: #{decoder_block_forward.2} parent=11 // pred_check_branch
        %120 = sbr.rel (%p118) target = $region16
      $region15: #{decoder_block_forward.2} parent=11 // pred_region
        _
      $region16: #{decoder_block_forward.2} parent=11 // pred_fallthru
        _
      // Predicated region
      $region17: #{decoder_block_forward.2} parent=11 // pred_check
        %p121 = pneg %p77
      $region18: #{decoder_block_forward.2} parent=11 // pred_check_branch
        %123 = sbr.rel (%p121) target = $region20
      $region19: #{decoder_block_forward.2} parent=11 // pred_region
        _
      $region20: #{decoder_block_forward.2} parent=11 // pred_fallthru
        _
    $region12: #{decoder_block_forward.2} parent=5 // pred_fallthru
      _
    %p124 = scmp.lt.s32.totalorder %s9, 8
    // Predicated region
    $region21: #{decoder_block_forward.2} parent=5 // pred_check
      %p125 = pneg %p124
    $region22: #{decoder_block_forward.2} parent=5 // pred_check_branch
      %127 = sbr.rel (%p125) target = $region24
    $region23: #{decoder_block_forward.2} parent=5 // pred_region
      // Predicated region
      $region25: #{decoder_block_forward.2} parent=23 // pred_check
        %p128 = pneg %p29
      $region26: #{decoder_block_forward.2} parent=23 // pred_check_branch
        %130 = sbr.rel (%p128) target = $region28
      $region27: #{decoder_block_forward.2} parent=23 // pred_region
        %s131 = smul.u32 32, %s9
        %p132 = scmp.lt.s32.totalorder %s131, 255
        %s133 = scalar_select %p132, %s131, 255
        %s134 = smul.addr %s133, 8
        %s135 = scalar_lea.vmem %s0, %s134
        %s136 = smul.u32 32, %s9
      $region28: #{decoder_block_forward.2} parent=23 // pred_fallthru
        _
    $region24: #{decoder_block_forward.2} parent=5 // pred_fallthru
      _
    %p137 = scmp.le.s32.totalorder 1, %s9
    %p138 = scmp.lt.s32.totalorder %s9, 9
    %p139 = pnand %p137, %p138
    %p140 = pneg %p139
    // Predicated region
    $region29: #{decoder_block_forward.2} parent=5 // pred_check
      _
    $region30: #{decoder_block_forward.2} parent=5 // pred_check_branch
      %142 = sbr.rel (%p139) target = $region32
    $region31: #{decoder_block_forward.2} parent=5 // pred_region
      %s143 = ssub.s32 %s9, 1
      %s144 = smul.u32 32, %s14
      %p145 = scmp.lt.s32.totalorder %s144, 255
      %s146 = scalar_select %p145, %s144, 255
      %s147 = smul.addr %s146, 8
      %s148 = scalar_lea.vmem %s0, %s147
      %p149 = pneg %p35
      %p150 = pneg %p32
      %p151 = pneg %p56
      %p152 = pneg %p53
      %p153 = pneg %p77
      %p154 = pneg %p74
      %p155 = pneg %p103
      %p156 = pneg %p100
      %s157 = smul.u32 32, %s14
      %p158 = scmp.lt.s32.totalorder %s157, 255
      %s159 = scalar_select %p158, %s157, 255
      %s160 = smul.addr %s159, 8
      %s161 = scalar_lea.vmem %s3, %s160
      %s162 = smul.u32 32, %s14
      %p163 = scmp.lt.s32.totalorder %s162, 255
      %s164 = scalar_select %p163, %s162, 255
      %s165 = smul.addr %s164, 8
      %s166 = scalar_lea.vmem %s0, %s165
      %s167 = smul.u32 32, %s14
      %s168 = smul.u32 32, %s14
      %p169 = scmp.lt.s32.totalorder %s168, 255
      %s170 = scalar_select %p169, %s168, 255
      %s171 = smul.addr %s170, 8
      %s172 = scalar_lea.vmem %s3, %s171
      %s173 = smul.u32 32, %s14
      %v174 = vld [vmem:[%s166] sm:$0xff]
      %v175 = vld [vmem:[%s166 + $0x8] sm:$0xff]
      %v176 = vld [vmem:[%s166 + $0x10] sm:$0xff]
      %v177 = vld [vmem:[%s166 + $0x18] sm:$0xff]
      %v178 = vld [vmem:[%s166 + $0x20] sm:$0xff]
      %v179 = vld [vmem:[%s166 + $0x28] sm:$0xff]
      %v180 = vld [vmem:[%s166 + $0x30] sm:$0xff]
      %v181 = vld [vmem:[%s166 + $0x38] sm:$0xff]
      %v182 = vld [vmem:[%s166 + $0x40] sm:$0xff]
      %v183 = vld [vmem:[%s166 + $0x48] sm:$0xff]
      %v184 = vld [vmem:[%s166 + $0x50] sm:$0xff]
      %v185 = vld [vmem:[%s166 + $0x58] sm:$0xff]
      %v186 = vld [vmem:[%s166 + $0x60] sm:$0xff]
      %v187 = vld [vmem:[%s166 + $0x68] sm:$0xff]
      %v188 = vld [vmem:[%s166 + $0x70] sm:$0xff]
      %v189 = vld [vmem:[%s166 + $0x78] sm:$0xff]
      %v190 = vld [vmem:[%s166 + $0x80] sm:$0xff]
      %v191 = vld [vmem:[%s166 + $0x88] sm:$0xff]
      %v192 = vld [vmem:[%s166 + $0x90] sm:$0xff]
      %v193 = vld [vmem:[%s166 + $0x98] sm:$0xff]
      %v194 = vld [vmem:[%s166 + $0xa0] sm:$0xff]
      %v195 = vld [vmem:[%s166 + $0xa8] sm:$0xff]
      %v196 = vld [vmem:[%s166 + $0xb0] sm:$0xff]
      %v197 = vld [vmem:[%s166 + $0xb8] sm:$0xff]
      %v198 = vld [vmem:[%s166 + $0xc0] sm:$0xff]
      %v199 = vld [vmem:[%s166 + $0xc8] sm:$0xff]
      %v200 = vld [vmem:[%s166 + $0xd0] sm:$0xff]
      %v201 = vld [vmem:[%s166 + $0xd8] sm:$0xff]
      %v202 = vld [vmem:[%s166 + $0xe0] sm:$0xff]
      %v203 = vld [vmem:[%s166 + $0xe8] sm:$0xff]
      %v204 = vld [vmem:[%s166 + $0xf0] sm:$0xff]
      %v205 = vld [vmem:[%s166 + $0xf8] sm:$0xff]
      %v206 = vld [vmem:[%s1] sm:$0xff]
      %v207 = vld [vmem:[%s1 + $0x8] sm:$0xff]
      %v208 = vld [vmem:[%s1 + $0x10] sm:$0xff]
      %v209 = vld [vmem:[%s1 + $0x18] sm:$0xff]
      %v210 = vld [vmem:[%s1 + $0x20] sm:$0xff]
      %v211 = vld [vmem:[%s1 + $0x28] sm:$0xff]
      %v212 = vld [vmem:[%s1 + $0x30] sm:$0xff]
      %v213 = vld [vmem:[%s1 + $0x38] sm:$0xff]
      %v214 = vld [vmem:[%s1 + $0x40] sm:$0xff]
      %v215 = vld [vmem:[%s2] sm:$0x1]
      %v217 = vlaneseq
      %v218 = vshrl.u32 %v217, 7
      %v219 = vsub.s32 0, %v218
      %v220 = vrot.slane %v215, %v219
      %vm222 = vcmask 588800
      %v224 = vsel %vm222, %v174, 0
      %v227 = vsel %vm222, %v175, 0
      %v230 = vsel %vm222, %v176, 0
      %v233 = vsel %vm222, %v177, 0
      %v236 = vsel %vm222, %v178, 0
      %v239 = vsel %vm222, %v179, 0
      %v242 = vsel %vm222, %v180, 0
      %v245 = vsel %vm222, %v181, 0
      %v248 = vsel %vm222, %v182, 0
      %v251 = vsel %vm222, %v183, 0
      %v254 = vsel %vm222, %v184, 0
      %v257 = vsel %vm222, %v185, 0
      %v260 = vsel %vm222, %v186, 0
      %v263 = vsel %vm222, %v187, 0
      %v266 = vsel %vm222, %v188, 0
      %v269 = vsel %vm222, %v189, 0
      %v272 = vsel %vm222, %v190, 0
      %v275 = vsel %vm222, %v191, 0
      %v278 = vsel %vm222, %v192, 0
      %v281 = vsel %vm222, %v193, 0
      %v284 = vsel %vm222, %v194, 0
      %v287 = vsel %vm222, %v195, 0
      %v290 = vsel %vm222, %v196, 0
      %v293 = vsel %vm222, %v197, 0
      %v296 = vsel %vm222, %v198, 0
      %v299 = vsel %vm222, %v199, 0
      %v302 = vsel %vm222, %v200, 0
      %v305 = vsel %vm222, %v201, 0
      %v308 = vsel %vm222, %v202, 0
      %v311 = vsel %vm222, %v203, 0
      %v314 = vsel %vm222, %v204, 0
      %v317 = vsel %vm222, %v205, 0
      %319 = vmatprep.subr.mxu0 0.0
      %320 = vmatpush1.msra.mxu0 %v206
      %321 = vmatprep.subr.mxu0 0.0
      %322 = vmatpush1.msra.mxu0 %v207
      %323 = vmatprep.subr.mxu0 0.0
      %324 = vmatpush1.msra.mxu0 %v208
      %325 = vmatprep.subr.mxu0 0.0
      %326 = vmatpush1.msra.mxu0 %v209
      %327 = vmatprep.subr.mxu0 0.0
      %328 = vmatpush1.msra.mxu0 %v210
      %329 = vmatprep.subr.mxu0 0.0
      %330 = vmatpush1.msra.mxu0 %v211
      %331 = vmatprep.subr.mxu0 0.0
      %332 = vmatpush1.msra.mxu0 %v212
      %333 = vmatprep.subr.mxu0 0.0
      %334 = vmatpush1.msra.mxu0 %v213
      %335 = vmatprep.subr.mxu0 0.0
      %336 = vmatpush1.msra.mxu0 %v214
      %337 = vmatprep.subr.mxu0 0.0
      %338 = vmatpush1.msra.mxu0 0.0
      %339 = vmatprep.subr.mxu0 0.0
      %340 = vmatpush1.msra.mxu0 0.0
      %341 = vmatprep.subr.mxu0 0.0
      %342 = vmatpush1.msra.mxu0 0.0
      %343 = vmatprep.subr.mxu0 0.0
      %344 = vmatpush1.msra.mxu0 0.0
      %345 = vmatprep.subr.mxu0 0.0
      %346 = vmatpush1.msra.mxu0 0.0
      %347 = vmatprep.subr.mxu0 0.0
      %348 = vmatpush1.msra.mxu0 0.0
      %349 = vmatprep.subr.mxu0 0.0
      %350 = vmatpush1.msra.mxu0 0.0
      %351 = vmatprep.subr.mxu0 0.0
      %352 = vmatpush1.msra.mxu0 0.0
      %353 = vmatprep.subr.mxu0 0.0
      %354 = vmatpush1.msra.mxu0 0.0
      %355 = vmatprep.subr.mxu0 0.0
      %356 = vmatpush1.msra.mxu0 0.0
      %357 = vmatprep.subr.mxu0 0.0
      %358 = vmatpush1.msra.mxu0 0.0
      %359 = vmatprep.subr.mxu0 0.0
      %360 = vmatpush1.msra.mxu0 0.0
      %361 = vmatprep.subr.mxu0 0.0
      %362 = vmatpush1.msra.mxu0 0.0
      %363 = vmatprep.subr.mxu0 0.0
      %364 = vmatpush1.msra.mxu0 0.0
      %365 = vmatprep.subr.mxu0 0.0
      %366 = vmatpush1.msra.mxu0 0.0
      %367 = vmatprep.subr.mxu0 0.0
      %368 = vmatpush1.msra.mxu0 0.0
      %369 = vmatprep.subr.mxu0 0.0
      %370 = vmatpush1.msra.mxu0 0.0
      %371 = vmatprep.subr.mxu0 0.0
      %372 = vmatpush1.msra.mxu0 0.0
      %373 = vmatprep.subr.mxu0 0.0
      %374 = vmatpush1.msra.mxu0 0.0
      %375 = vmatprep.subr.mxu0 0.0
      %376 = vmatpush1.msra.mxu0 0.0
      %377 = vmatprep.subr.mxu0 0.0
      %378 = vmatpush1.msra.mxu0 0.0
      %379 = vmatprep.subr.mxu0 0.0
      %380 = vmatpush1.msra.mxu0 0.0
      %381 = vmatprep.subr.mxu0 0.0
      %382 = vmatpush1.msra.mxu0 0.0
      %383 = vmatprep.mubr.f32.mxu0 0.0
      %384 = vmatmul.mubr.f32.gmra.mrb[0].mxu0 %v224
      %v385 = vpop.f32.mrb[0].mxu0
      %v386 = vadd.f32 %v220, %v385
      %v387 = vpop.f32.mrb[0].mxu0
      %388 = vmatprep.mubr.f32.mxu0 0.0
      %389 = vmatmul.mubr.f32.gmra.mrb[0].mxu0 %v227
      %v390 = vpop.f32.mrb[0].mxu0
      %v391 = vadd.f32 %v220, %v390
      %v392 = vpop.f32.mrb[0].mxu0
      %393 = vmatprep.mubr.f32.mxu0 0.0
      %394 = vmatmul.mubr.f32.gmra.mrb[0].mxu0 %v230
      %v395 = vpop.f32.mrb[0].mxu0
      %v396 = vadd.f32 %v220, %v395
      %v397 = vpop.f32.mrb[0].mxu0
      %398 = vmatprep.mubr.f32.mxu0 0.0
      %399 = vmatmul.mubr.f32.gmra.mrb[0].mxu0 %v233
      %v400 = vpop.f32.mrb[0].mxu0
      %v401 = vadd.f32 %v220, %v400
      %v402 = vpop.f32.mrb[0].mxu0
      %403 = vmatprep.mubr.f32.mxu0 0.0
      %404 = vmatmul.mubr.f32.gmra.mrb[0].mxu0 %v236
      %v405 = vpop.f32.mrb[0].mxu0
      %v406 = vadd.f32 %v220, %v405
      %v407 = vpop.f32.mrb[0].mxu0
      %408 = vmatprep.mubr.f32.mxu0 0.0
      %409 = vmatmul.mubr.f32.gmra.mrb[0].mxu0 %v239
      %v410 = vpop.f32.mrb[0].mxu0
      %v411 = vadd.f32 %v220, %v410
      %v412 = vpop.f32.mrb[0].mxu0
      %413 = vmatprep.mubr.f32.mxu0 0.0
      %414 = vmatmul.mubr.f32.gmra.mrb[0].mxu0 %v242
      %v415 = vpop.f32.mrb[0].mxu0
      %v416 = vadd.f32 %v220, %v415
      %v417 = vpop.f32.mrb[0].mxu0
      %418 = vmatprep.mubr.f32.mxu0 0.0
      %419 = vmatmul.mubr.f32.gmra.mrb[0].mxu0 %v245
      %v420 = vpop.f32.mrb[0].mxu0
      %v421 = vadd.f32 %v220, %v420
      %v422 = vpop.f32.mrb[0].mxu0
      %423 = vmatprep.mubr.f32.mxu0 0.0
      %424 = vmatmul.mubr.f32.gmra.mrb[0].mxu0 %v248
      %v425 = vpop.f32.mrb[0].mxu0
      %v426 = vadd.f32 %v220, %v425
      %v427 = vpop.f32.mrb[0].mxu0
      %428 = vmatprep.mubr.f32.mxu0 0.0
      %429 = vmatmul.mubr.f32.gmra.mrb[0].mxu0 %v251
      %v430 = vpop.f32.mrb[0].mxu0
      %v431 = vadd.f32 %v220, %v430
      %v432 = vpop.f32.mrb[0].mxu0
      %433 = vmatprep.mubr.f32.mxu0 0.0
      %434 = vmatmul.mubr.f32.gmra.mrb[0].mxu0 %v254
      %v435 = vpop.f32.mrb[0].mxu0
      %v436 = vadd.f32 %v220, %v435
      %v437 = vpop.f32.mrb[0].mxu0
      %438 = vmatprep.mubr.f32.mxu0 0.0
      %439 = vmatmul.mubr.f32.gmra.mrb[0].mxu0 %v257
      %v440 = vpop.f32.mrb[0].mxu0
      %v441 = vadd.f32 %v220, %v440
      %v442 = vpop.f32.mrb[0].mxu0
      %443 = vmatprep.mubr.f32.mxu0 0.0
      %444 = vmatmul.mubr.f32.gmra.mrb[0].mxu0 %v260
      %v445 = vpop.f32.mrb[0].mxu0
      %v446 = vadd.f32 %v220, %v445
      %v447 = vpop.f32.mrb[0].mxu0
      %448 = vmatprep.mubr.f32.mxu0 0.0
      %449 = vmatmul.mubr.f32.gmra.mrb[0].mxu0 %v263
      %v450 = vpop.f32.mrb[0].mxu0
      %v451 = vadd.f32 %v220, %v450
      %v452 = vpop.f32.mrb[0].mxu0
      %453 = vmatprep.mubr.f32.mxu0 0.0
      %454 = vmatmul.mubr.f32.gmra.mrb[0].mxu0 %v266
      %v455 = vpop.f32.mrb[0].mxu0
      %v456 = vadd.f32 %v220, %v455
      %v457 = vpop.f32.mrb[0].mxu0
      %458 = vmatprep.mubr.f32.mxu0 0.0
      %459 = vmatmul.mubr.f32.gmra.mrb[0].mxu0 %v269
      %v460 = vpop.f32.mrb[0].mxu0
      %v461 = vadd.f32 %v220, %v460
      %v462 = vpop.f32.mrb[0].mxu0
      %463 = vmatprep.mubr.f32.mxu0 0.0
      %464 = vmatmul.mubr.f32.gmra.mrb[0].mxu0 %v272
      %v465 = vpop.f32.mrb[0].mxu0
      %v466 = vadd.f32 %v220, %v465
      %v467 = vpop.f32.mrb[0].mxu0
      %468 = vmatprep.mubr.f32.mxu0 0.0
      %469 = vmatmul.mubr.f32.gmra.mrb[0].mxu0 %v275
      %v470 = vpop.f32.mrb[0].mxu0
      %v471 = vadd.f32 %v220, %v470
      %v472 = vpop.f32.mrb[0].mxu0
      %473 = vmatprep.mubr.f32.mxu0 0.0
      %474 = vmatmul.mubr.f32.gmra.mrb[0].mxu0 %v278
      %v475 = vpop.f32.mrb[0].mxu0
      %v476 = vadd.f32 %v220, %v475
      %v477 = vpop.f32.mrb[0].mxu0
      %478 = vmatprep.mubr.f32.mxu0 0.0
      %479 = vmatmul.mubr.f32.gmra.mrb[0].mxu0 %v281
      %v480 = vpop.f32.mrb[0].mxu0
      %v481 = vadd.f32 %v220, %v480
      %v482 = vpop.f32.mrb[0].mxu0
      %483 = vmatprep.mubr.f32.mxu0 0.0
      %484 = vmatmul.mubr.f32.gmra.mrb[0].mxu0 %v284
      %v485 = vpop.f32.mrb[0].mxu0
      %v486 = vadd.f32 %v220, %v485
      %v487 = vpop.f32.mrb[0].mxu0
      %488 = vmatprep.mubr.f32.mxu0 0.0
      %489 = vmatmul.mubr.f32.gmra.mrb[0].mxu0 %v287
      %v490 = vpop.f32.mrb[0].mxu0
      %v491 = vadd.f32 %v220, %v490
      %v492 = vpop.f32.mrb[0].mxu0
      %493 = vmatprep.mubr.f32.mxu0 0.0
      %494 = vmatmul.mubr.f32.gmra.mrb[0].mxu0 %v290
      %v495 = vpop.f32.mrb[0].mxu0
      %v496 = vadd.f32 %v220, %v495
      %v497 = vpop.f32.mrb[0].mxu0
      %498 = vmatprep.mubr.f32.mxu0 0.0
      %499 = vmatmul.mubr.f32.gmra.mrb[0].mxu0 %v293
      %v500 = vpop.f32.mrb[0].mxu0
      %v501 = vadd.f32 %v220, %v500
      %v502 = vpop.f32.mrb[0].mxu0
      %503 = vmatprep.mubr.f32.mxu0 0.0
      %504 = vmatmul.mubr.f32.gmra.mrb[0].mxu0 %v296
      %v505 = vpop.f32.mrb[0].mxu0
      %v506 = vadd.f32 %v220, %v505
      %v507 = vpop.f32.mrb[0].mxu0
      %508 = vmatprep.mubr.f32.mxu0 0.0
      %509 = vmatmul.mubr.f32.gmra.mrb[0].mxu0 %v299
      %v510 = vpop.f32.mrb[0].mxu0
      %v511 = vadd.f32 %v220, %v510
      %v512 = vpop.f32.mrb[0].mxu0
      %513 = vmatprep.mubr.f32.mxu0 0.0
      %514 = vmatmul.mubr.f32.gmra.mrb[0].mxu0 %v302
      %v515 = vpop.f32.mrb[0].mxu0
      %v516 = vadd.f32 %v220, %v515
      %v517 = vpop.f32.mrb[0].mxu0
      %518 = vmatprep.mubr.f32.mxu0 0.0
      %519 = vmatmul.mubr.f32.gmra.mrb[0].mxu0 %v305
      %v520 = vpop.f32.mrb[0].mxu0
      %v521 = vadd.f32 %v220, %v520
      %v522 = vpop.f32.mrb[0].mxu0
      %523 = vmatprep.mubr.f32.mxu0 0.0
      %524 = vmatmul.mubr.f32.gmra.mrb[0].mxu0 %v308
      %v525 = vpop.f32.mrb[0].mxu0
      %v526 = vadd.f32 %v220, %v525
      %v527 = vpop.f32.mrb[0].mxu0
      %528 = vmatprep.mubr.f32.mxu0 0.0
      %529 = vmatmul.mubr.f32.gmra.mrb[0].mxu0 %v311
      %v530 = vpop.f32.mrb[0].mxu0
      %v531 = vadd.f32 %v220, %v530
      %v532 = vpop.f32.mrb[0].mxu0
      %533 = vmatprep.mubr.f32.mxu0 0.0
      %534 = vmatmul.mubr.f32.gmra.mrb[0].mxu0 %v314
      %v535 = vpop.f32.mrb[0].mxu0
      %v536 = vadd.f32 %v220, %v535
      %v537 = vpop.f32.mrb[0].mxu0
      %538 = vmatprep.mubr.f32.mxu0 0.0
      %539 = vmatmul.mubr.f32.gmra.mrb[0].mxu0 %v317
      %v540 = vpop.f32.mrb[0].mxu0
      %v541 = vadd.f32 %v220, %v540
      %v542 = vpop.f32.mrb[0].mxu0
      %543 = vdwg.mxu0
      %vm544 = vcmp.ge.f32.partialorder %v386, 0.0
      %vm545 = vcmp.ge.f32.partialorder %v391, 0.0
      %vm546 = vcmp.ge.f32.partialorder %v396, 0.0
      %vm547 = vcmp.ge.f32.partialorder %v401, 0.0
      %vm548 = vcmp.ge.f32.partialorder %v406, 0.0
      %vm549 = vcmp.ge.f32.partialorder %v411, 0.0
      %vm550 = vcmp.ge.f32.partialorder %v416, 0.0
      %vm551 = vcmp.ge.f32.partialorder %v421, 0.0
      %vm552 = vcmp.ge.f32.partialorder %v426, 0.0
      %vm553 = vcmp.ge.f32.partialorder %v431, 0.0
      %vm554 = vcmp.ge.f32.partialorder %v436, 0.0
      %vm555 = vcmp.ge.f32.partialorder %v441, 0.0
      %vm556 = vcmp.ge.f32.partialorder %v446, 0.0
      %vm557 = vcmp.ge.f32.partialorder %v451, 0.0
      %vm558 = vcmp.ge.f32.partialorder %v456, 0.0
      %vm559 = vcmp.ge.f32.partialorder %v461, 0.0
      %vm560 = vcmp.ge.f32.partialorder %v466, 0.0
      %vm561 = vcmp.ge.f32.partialorder %v471, 0.0
      %vm562 = vcmp.ge.f32.partialorder %v476, 0.0
      %vm563 = vcmp.ge.f32.partialorder %v481, 0.0
      %vm564 = vcmp.ge.f32.partialorder %v486, 0.0
      %vm565 = vcmp.ge.f32.partialorder %v491, 0.0
      %vm566 = vcmp.ge.f32.partialorder %v496, 0.0
      %vm567 = vcmp.ge.f32.partialorder %v501, 0.0
      %vm568 = vcmp.ge.f32.partialorder %v506, 0.0
      %vm569 = vcmp.ge.f32.partialorder %v511, 0.0
      %vm570 = vcmp.ge.f32.partialorder %v516, 0.0
      %vm571 = vcmp.ge.f32.partialorder %v521, 0.0
      %vm572 = vcmp.ge.f32.partialorder %v526, 0.0
      %vm573 = vcmp.ge.f32.partialorder %v531, 0.0
      %vm574 = vcmp.ge.f32.partialorder %v536, 0.0
      %vm575 = vcmp.ge.f32.partialorder %v541, 0.0
      %v576 = vmul.f32 %v386, 0.1
      %v577 = vmul.f32 %v391, 0.1
      %v578 = vmul.f32 %v396, 0.1
      %v579 = vmul.f32 %v401, 0.1
      %v580 = vmul.f32 %v406, 0.1
      %v581 = vmul.f32 %v411, 0.1
      %v582 = vmul.f32 %v416, 0.1
      %v583 = vmul.f32 %v421, 0.1
      %v584 = vmul.f32 %v426, 0.1
      %v585 = vmul.f32 %v431, 0.1
      %v586 = vmul.f32 %v436, 0.1
      %v587 = vmul.f32 %v441, 0.1
      %v588 = vmul.f32 %v446, 0.1
      %v589 = vmul.f32 %v451, 0.1
      %v590 = vmul.f32 %v456, 0.1
      %v591 = vmul.f32 %v461, 0.1
      %v592 = vmul.f32 %v466, 0.1
      %v593 = vmul.f32 %v471, 0.1
      %v594 = vmul.f32 %v476, 0.1
      %v595 = vmul.f32 %v481, 0.1
      %v596 = vmul.f32 %v486, 0.1
      %v597 = vmul.f32 %v491, 0.1
      %v598 = vmul.f32 %v496, 0.1
      %v599 = vmul.f32 %v501, 0.1
      %v600 = vmul.f32 %v506, 0.1
      %v601 = vmul.f32 %v511, 0.1
      %v602 = vmul.f32 %v516, 0.1
      %v603 = vmul.f32 %v521, 0.1
      %v604 = vmul.f32 %v526, 0.1
      %v605 = vmul.f32 %v531, 0.1
      %v606 = vmul.f32 %v536, 0.1
      %v607 = vmul.f32 %v541, 0.1
      %v608 = vsel %vm544, %v386, %v576
      %v609 = vsel %vm545, %v391, %v577
      %v610 = vsel %vm546, %v396, %v578
      %v611 = vsel %vm547, %v401, %v579
      %v612 = vsel %vm548, %v406, %v580
      %v613 = vsel %vm549, %v411, %v581
      %v614 = vsel %vm550, %v416, %v582
      %v615 = vsel %vm551, %v421, %v583
      %v616 = vsel %vm552, %v426, %v584
      %v617 = vsel %vm553, %v431, %v585
      %v618 = vsel %vm554, %v436, %v586
      %v619 = vsel %vm555, %v441, %v587
      %v620 = vsel %vm556, %v446, %v588
      %v621 = vsel %vm557, %v451, %v589
      %v622 = vsel %vm558, %v456, %v590
      %v623 = vsel %vm559, %v461, %v591
      %v624 = vsel %vm560, %v466, %v592
      %v625 = vsel %vm561, %v471, %v593
      %v626 = vsel %vm562, %v476, %v594
      %v627 = vsel %vm563, %v481, %v595
      %v628 = vsel %vm564, %v486, %v596
      %v629 = vsel %vm565, %v491, %v597
      %v630 = vsel %vm566, %v496, %v598
      %v631 = vsel %vm567, %v501, %v599
      %v632 = vsel %vm568, %v506, %v600
      %v633 = vsel %vm569, %v511, %v601
      %v634 = vsel %vm570, %v516, %v602
      %v635 = vsel %vm571, %v521, %v603
      %v636 = vsel %vm572, %v526, %v604
      %v637 = vsel %vm573, %v531, %v605
      %v638 = vsel %vm574, %v536, %v606
      %v639 = vsel %vm575, %v541, %v607
      %vm640 = vcmask 64512
      %641 = vst.msk [vmem:[%s172] sm:$0xff] %vm640, %v608
      %642 = vst.msk [vmem:[%s172 + $0x8] sm:$0xff] %vm640, %v609
      %643 = vst.msk [vmem:[%s172 + $0x10] sm:$0xff] %vm640, %v610
      %644 = vst.msk [vmem:[%s172 + $0x18] sm:$0xff] %vm640, %v611
      %645 = vst.msk [vmem:[%s172 + $0x20] sm:$0xff] %vm640, %v612
      %646 = vst.msk [vmem:[%s172 + $0x28] sm:$0xff] %vm640, %v613
      %647 = vst.msk [vmem:[%s172 + $0x30] sm:$0xff] %vm640, %v614
      %648 = vst.msk [vmem:[%s172 + $0x38] sm:$0xff] %vm640, %v615
      %649 = vst.msk [vmem:[%s172 + $0x40] sm:$0xff] %vm640, %v616
      %650 = vst.msk [vmem:[%s172 + $0x48] sm:$0xff] %vm640, %v617
      %651 = vst.msk [vmem:[%s172 + $0x50] sm:$0xff] %vm640, %v618
      %652 = vst.msk [vmem:[%s172 + $0x58] sm:$0xff] %vm640, %v619
      %653 = vst.msk [vmem:[%s172 + $0x60] sm:$0xff] %vm640, %v620
      %654 = vst.msk [vmem:[%s172 + $0x68] sm:$0xff] %vm640, %v621
      %655 = vst.msk [vmem:[%s172 + $0x70] sm:$0xff] %vm640, %v622
      %656 = vst.msk [vmem:[%s172 + $0x78] sm:$0xff] %vm640, %v623
      %657 = vst.msk [vmem:[%s172 + $0x80] sm:$0xff] %vm640, %v624
      %658 = vst.msk [vmem:[%s172 + $0x88] sm:$0xff] %vm640, %v625
      %659 = vst.msk [vmem:[%s172 + $0x90] sm:$0xff] %vm640, %v626
      %660 = vst.msk [vmem:[%s172 + $0x98] sm:$0xff] %vm640, %v627
      %661 = vst.msk [vmem:[%s172 + $0xa0] sm:$0xff] %vm640, %v628
      %662 = vst.msk [vmem:[%s172 + $0xa8] sm:$0xff] %vm640, %v629
      %663 = vst.msk [vmem:[%s172 + $0xb0] sm:$0xff] %vm640, %v630
      %664 = vst.msk [vmem:[%s172 + $0xb8] sm:$0xff] %vm640, %v631
      %665 = vst.msk [vmem:[%s172 + $0xc0] sm:$0xff] %vm640, %v632
      %666 = vst.msk [vmem:[%s172 + $0xc8] sm:$0xff] %vm640, %v633
      %667 = vst.msk [vmem:[%s172 + $0xd0] sm:$0xff] %vm640, %v634
      %668 = vst.msk [vmem:[%s172 + $0xd8] sm:$0xff] %vm640, %v635
      %669 = vst.msk [vmem:[%s172 + $0xe0] sm:$0xff] %vm640, %v636
      %670 = vst.msk [vmem:[%s172 + $0xe8] sm:$0xff] %vm640, %v637
      %671 = vst.msk [vmem:[%s172 + $0xf0] sm:$0xff] %vm640, %v638
      %672 = vst.msk [vmem:[%s172 + $0xf8] sm:$0xff] %vm640, %v639
      %s673 = smul.u32 32, %s14
      %p674 = scmp.lt.s32.totalorder %s673, 255
      %s675 = scalar_select %p674, %s673, 255
      %s676 = smul.addr %s675, 8
      %s677 = scalar_lea.vmem %s3, %s676
      // Predicated region
      $region33: #{decoder_block_forward.2} parent=31 // pred_check
        %p678 = pneg %p100
      $region34: #{decoder_block_forward.2} parent=31 // pred_check_branch
        %680 = sbr.rel (%p678) target = $region36
      $region35: #{decoder_block_forward.2} parent=31 // pred_region
        %s681 = smul.u32 32, %s14
      $region36: #{decoder_block_forward.2} parent=31 // pred_fallthru
        _
    $region32: #{decoder_block_forward.2} parent=5 // pred_fallthru
      _
    %p682 = scmp.le.s32.totalorder 2, %s9
    // Predicated region
    $region37: #{decoder_block_forward.2} parent=5 // pred_check
      %p683 = pneg %p682
    $region38: #{decoder_block_forward.2} parent=5 // pred_check_branch
      %685 = sbr.rel (%p683) target = $region40
    $region39: #{decoder_block_forward.2} parent=5 // pred_region
      %s686 = ssub.s32 %s9, 2
      // Predicated region
      $region41: #{decoder_block_forward.2} parent=39 // pred_check
        %p687 = pneg %p106
      $region42: #{decoder_block_forward.2} parent=39 // pred_check_branch
        %689 = sbr.rel (%p687) target = $region44
      $region43: #{decoder_block_forward.2} parent=39 // pred_region
        %s690 = smul.u32 32, %s15
        %p691 = scmp.lt.s32.totalorder %s690, 255
        %s692 = scalar_select %p691, %s690, 255
        %s693 = smul.addr %s692, 8
        %s694 = scalar_lea.vmem %s3, %s693
      $region44: #{decoder_block_forward.2} parent=39 // pred_fallthru
        _
    $region40: #{decoder_block_forward.2} parent=5 // pred_fallthru
      _
  $region6: #{decoder_block_forward.2} parent=0 // loop_footer
    %s13 = sadd.s32 1, %s9
  $region7: #{decoder_block_forward.2} parent=0 // loop_footer_branch
    %8 = sbr.rel target = $region3
  $region8: #{decoder_block_forward.2} parent=0 // loop_exit
    _

// kernel: decoder_block_forward.3
$region0: #{decoder_block_forward.3}
  #allocation0 [shape = 'u32[]', space=smem, size = 0x4, offset = 0x4, fixed_abs, tag = 'smem constant byte address 0x4 - core index']
  #allocation1 [shape = 'u32[144,128]{1,0:T(1,128)}', space=vmem, size = 0x12000, scoped, tag = 'internal scratch']
  %s0 = inlined_call_operand.vmem [shape: f32[2048,108], index: 0, kind: input, shape index: {}]
  %s1 = inlined_call_operand.vmem [shape: f32[108,8], index: 1, kind: input, shape index: {}]
  %s2 = inlined_call_operand.vmem [shape: f32[1,8], index: 2, kind: input, shape index: {}]
  %s3 = inlined_call_operand.vmem [shape: f32[2048,8], index: 3, kind: output, shape index: {}]
  %s4 = sld [smem:[#allocation0]]
  $region45: #{decoder_block_forward.3} parent=0
    _
  %s6 = ssub.s32 1, %s4
  %s7 = scalar_select 0, %s6, %s4
  loop: start=0, step=1, limit=10
  $region2: #{decoder_block_forward.3} parent=0 // loop_pre_header
    _
  $region3: #{decoder_block_forward.3} parent=0 // loop_header
    %s9 = sphi 0, %s13
    %p10 = scmp.ge.s32.totalorder %s9, 10
    %s19 = sphi 0, %s21
    %s22 = sphi 0, %s19
    %s23 = sphi 0, %s22
    %s39 = sphi 0, %s23
    %s43 = sphi 0, %s43
    %s45 = sphi 0, %s43
    %s46 = sphi 0, %s45
    %s60 = sphi 0, %s46
    %s64 = sphi 0, %s64
    %s66 = sphi 0, %s64
    %s67 = sphi 0, %s66
    %s81 = sphi 0, %s67
    %s87 = sphi 0, %s89
    %s90 = sphi 0, %s87
    %s91 = sphi 0, %s90
    %s107 = sphi 0, %s91
  $region4: #{decoder_block_forward.3} parent=0 // loop_header_branch
    %12 = sbr.rel (%p10) target = $region8
  $region5: #{decoder_block_forward.3} parent=0 // loop_body
    %s14 = ssub.s32 %s9, 1
    %s15 = ssub.s32 %s9, 2
    %s16 = sadd.s32 %s9, 1
    %s17 = ssub.s32 %s9, %s16
    %p18 = scmp.eq.s32.totalorder %s17, 0
    %s20 = sadd.s32 %s19, 1
    %s21 = scalar_select %p18, %s19, %s20
    %p24 = pneg %p18
    %p25 = scmp.eq.s32.totalorder %s9, 7
    %p26 = por %p24, %p25
    %p27 = scmp.ne.s32.totalorder %s19, %s22
    %p28 = scmp.eq.s32.totalorder %s9, 0
    %p29 = por %p27, %p28
    %p30 = scmp.ne.s32.totalorder %s19, %s22
    %p31 = scmp.eq.s32.totalorder %s14, 7
    %p32 = por %p30, %p31
    %p33 = scmp.ne.s32.totalorder %s22, %s23
    %p34 = scmp.eq.s32.totalorder %s14, 0
    %p35 = por %p33, %p34
    %p36 = scmp.ne.s32.totalorder %s22, %s23
    %p37 = scmp.eq.s32.totalorder %s15, 7
    %p38 = por %p36, %p37
    %p40 = scmp.ne.s32.totalorder %s23, %s39
    %p41 = scmp.eq.s32.totalorder %s15, 0
    %p42 = por %p40, %p41
    %s44 = sadd.s32 %s43, 1
    %p47 = scmp.eq.s32.totalorder %s9, 7
    %p48 = scmp.ne.s32.totalorder %s43, %s45
    %p49 = scmp.eq.s32.totalorder %s9, 0
    %p50 = por %p48, %p49
    %p51 = scmp.ne.s32.totalorder %s43, %s45
    %p52 = scmp.eq.s32.totalorder %s14, 7
    %p53 = por %p51, %p52
    %p54 = scmp.ne.s32.totalorder %s45, %s46
    %p55 = scmp.eq.s32.totalorder %s14, 0
    %p56 = por %p54, %p55
    %p57 = scmp.ne.s32.totalorder %s45, %s46
    %p58 = scmp.eq.s32.totalorder %s15, 7
    %p59 = por %p57, %p58
    %p61 = scmp.ne.s32.totalorder %s46, %s60
    %p62 = scmp.eq.s32.totalorder %s15, 0
    %p63 = por %p61, %p62
    %s65 = sadd.s32 %s64, 1
    %p68 = scmp.eq.s32.totalorder %s9, 7
    %p69 = scmp.ne.s32.totalorder %s64, %s66
    %p70 = scmp.eq.s32.totalorder %s9, 0
    %p71 = por %p69, %p70
    %p72 = scmp.ne.s32.totalorder %s64, %s66
    %p73 = scmp.eq.s32.totalorder %s14, 7
    %p74 = por %p72, %p73
    %p75 = scmp.ne.s32.totalorder %s66, %s67
    %p76 = scmp.eq.s32.totalorder %s14, 0
    %p77 = por %p75, %p76
    %p78 = scmp.ne.s32.totalorder %s66, %s67
    %p79 = scmp.eq.s32.totalorder %s15, 7
    %p80 = por %p78, %p79
    %p82 = scmp.ne.s32.totalorder %s67, %s81
    %p83 = scmp.eq.s32.totalorder %s15, 0
    %p84 = por %p82, %p83
    %s85 = ssub.s32 %s9, %s16
    %p86 = scmp.eq.s32.totalorder %s85, 0
    %s88 = sadd.s32 %s87, 1
    %s89 = scalar_select %p86, %s87, %s88
    %p92 = pneg %p86
    %p93 = scmp.eq.s32.totalorder %s9, 7
    %p94 = por %p92, %p93
    %p95 = scmp.ne.s32.totalorder %s87, %s90
    %p96 = scmp.eq.s32.totalorder %s9, 0
    %p97 = por %p95, %p96
    %p98 = scmp.ne.s32.totalorder %s87, %s90
    %p99 = scmp.eq.s32.totalorder %s14, 7
    %p100 = por %p98, %p99
    %p101 = scmp.ne.s32.totalorder %s90, %s91
    %p102 = scmp.eq.s32.totalorder %s14, 0
    %p103 = por %p101, %p102
    %p104 = scmp.ne.s32.totalorder %s90, %s91
    %p105 = scmp.eq.s32.totalorder %s15, 7
    %p106 = por %p104, %p105
    %p108 = scmp.ne.s32.totalorder %s91, %s107
    %p109 = scmp.eq.s32.totalorder %s15, 0
    %p110 = por %p108, %p109
    %p111 = scmp.le.s32.totalorder 1, %s9
    %p112 = scmp.lt.s32.totalorder %s9, 9
    %p113 = pnand %p111, %p112
    %p114 = pneg %p113
    // Predicated region
    $region9: #{decoder_block_forward.3} parent=5 // pred_check
      _
    $region10: #{decoder_block_forward.3} parent=5 // pred_check_branch
      %116 = sbr.rel (%p113) target = $region12
    $region11: #{decoder_block_forward.3} parent=5 // pred_region
      %s117 = ssub.s32 %s9, 1
      // Predicated region
      $region13: #{decoder_block_forward.3} parent=11 // pred_check
        %p118 = pneg %p56
      $region14: #{decoder_block_forward.3} parent=11 // pred_check_branch
        %120 = sbr.rel (%p118) target = $region16
      $region15: #{decoder_block_forward.3} parent=11 // pred_region
        _
      $region16: #{decoder_block_forward.3} parent=11 // pred_fallthru
        _
      // Predicated region
      $region17: #{decoder_block_forward.3} parent=11 // pred_check
        %p121 = pneg %p77
      $region18: #{decoder_block_forward.3} parent=11 // pred_check_branch
        %123 = sbr.rel (%p121) target = $region20
      $region19: #{decoder_block_forward.3} parent=11 // pred_region
        _
      $region20: #{decoder_block_forward.3} parent=11 // pred_fallthru
        _
    $region12: #{decoder_block_forward.3} parent=5 // pred_fallthru
      _
    %p124 = scmp.lt.s32.totalorder %s9, 8
    // Predicated region
    $region21: #{decoder_block_forward.3} parent=5 // pred_check
      %p125 = pneg %p124
    $region22: #{decoder_block_forward.3} parent=5 // pred_check_branch
      %127 = sbr.rel (%p125) target = $region24
    $region23: #{decoder_block_forward.3} parent=5 // pred_region
      // Predicated region
      $region25: #{decoder_block_forward.3} parent=23 // pred_check
        %p128 = pneg %p29
      $region26: #{decoder_block_forward.3} parent=23 // pred_check_branch
        %130 = sbr.rel (%p128) target = $region28
      $region27: #{decoder_block_forward.3} parent=23 // pred_region
        %s131 = smul.u32 32, %s9
        %p132 = scmp.lt.s32.totalorder %s131, 255
        %s133 = scalar_select %p132, %s131, 255
        %s134 = smul.addr %s133, 8
        %s135 = scalar_lea.vmem %s0, %s134
        %s136 = smul.u32 32, %s9
      $region28: #{decoder_block_forward.3} parent=23 // pred_fallthru
        _
    $region24: #{decoder_block_forward.3} parent=5 // pred_fallthru
      _
    %p137 = scmp.le.s32.totalorder 1, %s9
    %p138 = scmp.lt.s32.totalorder %s9, 9
    %p139 = pnand %p137, %p138
    %p140 = pneg %p139
    // Predicated region
    $region29: #{decoder_block_forward.3} parent=5 // pred_check
      _
    $region30: #{decoder_block_forward.3} parent=5 // pred_check_branch
      %142 = sbr.rel (%p139) target = $region32
    $region31: #{decoder_block_forward.3} parent=5 // pred_region
      %s143 = ssub.s32 %s9, 1
      %s144 = smul.u32 32, %s14
      %p145 = scmp.lt.s32.totalorder %s144, 255
      %s146 = scalar_select %p145, %s144, 255
      %s147 = smul.addr %s146, 8
      %s148 = scalar_lea.vmem %s0, %s147
      %p149 = pneg %p35
      %p150 = pneg %p32
      %p151 = pneg %p56
      %p152 = pneg %p53
      %p153 = pneg %p77
      %p154 = pneg %p74
      %p155 = pneg %p103
      %p156 = pneg %p100
      %s157 = smul.u32 32, %s14
      %p158 = scmp.lt.s32.totalorder %s157, 255
      %s159 = scalar_select %p158, %s157, 255
      %s160 = smul.addr %s159, 8
      %s161 = scalar_lea.vmem %s3, %s160
      %s162 = smul.u32 32, %s14
      %p163 = scmp.lt.s32.totalorder %s162, 255
      %s164 = scalar_select %p163, %s162, 255
      %s165 = smul.addr %s164, 8
      %s166 = scalar_lea.vmem %s0, %s165
      %s167 = smul.u32 32, %s14
      %s168 = smul.u32 32, %s14
      %p169 = scmp.lt.s32.totalorder %s168, 255
      %s170 = scalar_select %p169, %s168, 255
      %s171 = smul.addr %s170, 8
      %s172 = scalar_lea.vmem %s3, %s171
      %s173 = smul.u32 32, %s14
      %v174 = vld [vmem:[%s166] sm:$0xff]
      %v175 = vld [vmem:[%s166 + $0x8] sm:$0xff]
      %v176 = vld [vmem:[%s166 + $0x10] sm:$0xff]
      %v177 = vld [vmem:[%s166 + $0x18] sm:$0xff]
      %v178 = vld [vmem:[%s166 + $0x20] sm:$0xff]
      %v179 = vld [vmem:[%s166 + $0x28] sm:$0xff]
      %v180 = vld [vmem:[%s166 + $0x30] sm:$0xff]
      %v181 = vld [vmem:[%s166 + $0x38] sm:$0xff]
      %v182 = vld [vmem:[%s166 + $0x40] sm:$0xff]
      %v183 = vld [vmem:[%s166 + $0x48] sm:$0xff]
      %v184 = vld [vmem:[%s166 + $0x50] sm:$0xff]
      %v185 = vld [vmem:[%s166 + $0x58] sm:$0xff]
      %v186 = vld [vmem:[%s166 + $0x60] sm:$0xff]
      %v187 = vld [vmem:[%s166 + $0x68] sm:$0xff]
      %v188 = vld [vmem:[%s166 + $0x70] sm:$0xff]
      %v189 = vld [vmem:[%s166 + $0x78] sm:$0xff]
      %v190 = vld [vmem:[%s166 + $0x80] sm:$0xff]
      %v191 = vld [vmem:[%s166 + $0x88] sm:$0xff]
      %v192 = vld [vmem:[%s166 + $0x90] sm:$0xff]
      %v193 = vld [vmem:[%s166 + $0x98] sm:$0xff]
      %v194 = vld [vmem:[%s166 + $0xa0] sm:$0xff]
      %v195 = vld [vmem:[%s166 + $0xa8] sm:$0xff]
      %v196 = vld [vmem:[%s166 + $0xb0] sm:$0xff]
      %v197 = vld [vmem:[%s166 + $0xb8] sm:$0xff]
      %v198 = vld [vmem:[%s166 + $0xc0] sm:$0xff]
      %v199 = vld [vmem:[%s166 + $0xc8] sm:$0xff]
      %v200 = vld [vmem:[%s166 + $0xd0] sm:$0xff]
      %v201 = vld [vmem:[%s166 + $0xd8] sm:$0xff]
      %v202 = vld [vmem:[%s166 + $0xe0] sm:$0xff]
      %v203 = vld [vmem:[%s166 + $0xe8] sm:$0xff]
      %v204 = vld [vmem:[%s166 + $0xf0] sm:$0xff]
      %v205 = vld [vmem:[%s166 + $0xf8] sm:$0xff]
      %v206 = vld [vmem:[%s1] sm:$0xff]
      %v207 = vld [vmem:[%s1 + $0x8] sm:$0xff]
      %v208 = vld [vmem:[%s1 + $0x10] sm:$0xff]
      %v209 = vld [vmem:[%s1 + $0x18] sm:$0xff]
      %v210 = vld [vmem:[%s1 + $0x20] sm:$0xff]
      %v211 = vld [vmem:[%s1 + $0x28] sm:$0xff]
      %v212 = vld [vmem:[%s1 + $0x30] sm:$0xff]
      %v213 = vld [vmem:[%s1 + $0x38] sm:$0xff]
      %v214 = vld [vmem:[%s1 + $0x40] sm:$0xff]
      %v215 = vld [vmem:[%s1 + $0x48] sm:$0xff]
      %v216 = vld [vmem:[%s1 + $0x50] sm:$0xff]
      %v217 = vld [vmem:[%s1 + $0x58] sm:$0xff]
      %v218 = vld [vmem:[%s1 + $0x60] sm:$0xff]
      %v219 = vld [vmem:[%s1 + $0x68] sm:$0xf]
      %v220 = vld [vmem:[%s2] sm:$0x1]
      %v222 = vlaneseq
      %v223 = vshrl.u32 %v222, 7
      %v224 = vsub.s32 0, %v223
      %v225 = vrot.slane %v220, %v224
      %vm227 = vcmask 883712
      %v229 = vsel %vm227, %v174, 0
      %v232 = vsel %vm227, %v175, 0
      %v235 = vsel %vm227, %v176, 0
      %v238 = vsel %vm227, %v177, 0
      %v241 = vsel %vm227, %v178, 0
      %v244 = vsel %vm227, %v179, 0
      %v247 = vsel %vm227, %v180, 0
      %v250 = vsel %vm227, %v181, 0
      %v253 = vsel %vm227, %v182, 0
      %v256 = vsel %vm227, %v183, 0
      %v259 = vsel %vm227, %v184, 0
      %v262 = vsel %vm227, %v185, 0
      %v265 = vsel %vm227, %v186, 0
      %v268 = vsel %vm227, %v187, 0
      %v271 = vsel %vm227, %v188, 0
      %v274 = vsel %vm227, %v189, 0
      %v277 = vsel %vm227, %v190, 0
      %v280 = vsel %vm227, %v191, 0
      %v283 = vsel %vm227, %v192, 0
      %v286 = vsel %vm227, %v193, 0
      %v289 = vsel %vm227, %v194, 0
      %v292 = vsel %vm227, %v195, 0
      %v295 = vsel %vm227, %v196, 0
      %v298 = vsel %vm227, %v197, 0
      %v301 = vsel %vm227, %v198, 0
      %v304 = vsel %vm227, %v199, 0
      %v307 = vsel %vm227, %v200, 0
      %v310 = vsel %vm227, %v201, 0
      %v313 = vsel %vm227, %v202, 0
      %v316 = vsel %vm227, %v203, 0
      %v319 = vsel %vm227, %v204, 0
      %v322 = vsel %vm227, %v205, 0
      %vm324 = vcmask 1043456
      %v326 = vsel %vm324, %v219, 0
      %328 = vmatprep.subr.mxu0 0.0
      %329 = vmatpush1.msra.mxu0 %v206
      %330 = vmatprep.subr.mxu0 0.0
      %331 = vmatpush1.msra.mxu0 %v207
      %332 = vmatprep.subr.mxu0 0.0
      %333 = vmatpush1.msra.mxu0 %v208
      %334 = vmatprep.subr.mxu0 0.0
      %335 = vmatpush1.msra.mxu0 %v209
      %336 = vmatprep.subr.mxu0 0.0
      %337 = vmatpush1.msra.mxu0 %v210
      %338 = vmatprep.subr.mxu0 0.0
      %339 = vmatpush1.msra.mxu0 %v211
      %340 = vmatprep.subr.mxu0 0.0
      %341 = vmatpush1.msra.mxu0 %v212
      %342 = vmatprep.subr.mxu0 0.0
      %343 = vmatpush1.msra.mxu0 %v213
      %344 = vmatprep.subr.mxu0 0.0
      %345 = vmatpush1.msra.mxu0 %v214
      %346 = vmatprep.subr.mxu0 0.0
      %347 = vmatpush1.msra.mxu0 %v215
      %348 = vmatprep.subr.mxu0 0.0
      %349 = vmatpush1.msra.mxu0 %v216
      %350 = vmatprep.subr.mxu0 0.0
      %351 = vmatpush1.msra.mxu0 %v217
      %352 = vmatprep.subr.mxu0 0.0
      %353 = vmatpush1.msra.mxu0 %v218
      %354 = vmatprep.subr.mxu0 0.0
      %355 = vmatpush1.msra.mxu0 %v326
      %356 = vmatprep.subr.mxu0 0.0
      %357 = vmatpush1.msra.mxu0 0.0
      %358 = vmatprep.subr.mxu0 0.0
      %359 = vmatpush1.msra.mxu0 0.0
      %360 = vmatprep.subr.mxu0 0.0
      %361 = vmatpush1.msra.mxu0 0.0
      %362 = vmatprep.subr.mxu0 0.0
      %363 = vmatpush1.msra.mxu0 0.0
      %364 = vmatprep.subr.mxu0 0.0
      %365 = vmatpush1.msra.mxu0 0.0
      %366 = vmatprep.subr.mxu0 0.0
      %367 = vmatpush1.msra.mxu0 0.0
      %368 = vmatprep.subr.mxu0 0.0
      %369 = vmatpush1.msra.mxu0 0.0
      %370 = vmatprep.subr.mxu0 0.0
      %371 = vmatpush1.msra.mxu0 0.0
      %372 = vmatprep.subr.mxu0 0.0
      %373 = vmatpush1.msra.mxu0 0.0
      %374 = vmatprep.subr.mxu0 0.0
      %375 = vmatpush1.msra.mxu0 0.0
      %376 = vmatprep.subr.mxu0 0.0
      %377 = vmatpush1.msra.mxu0 0.0
      %378 = vmatprep.subr.mxu0 0.0
      %379 = vmatpush1.msra.mxu0 0.0
      %380 = vmatprep.subr.mxu0 0.0
      %381 = vmatpush1.msra.mxu0 0.0
      %382 = vmatprep.subr.mxu0 0.0
      %383 = vmatpush1.msra.mxu0 0.0
      %384 = vmatprep.subr.mxu0 0.0
      %385 = vmatpush1.msra.mxu0 0.0
      %386 = vmatprep.subr.mxu0 0.0
      %387 = vmatpush1.msra.mxu0 0.0
      %388 = vmatprep.subr.mxu0 0.0
      %389 = vmatpush1.msra.mxu0 0.0
      %390 = vmatprep.subr.mxu0 0.0
      %391 = vmatpush1.msra.mxu0 0.0
      %392 = vmatprep.mubr.f32.mxu0 0.0
      %393 = vmatmul.mubr.f32.gmra.mrb[0].mxu0 %v229
      %v394 = vpop.f32.mrb[0].mxu0
      %v395 = vadd.f32 %v225, %v394
      %v396 = vpop.f32.mrb[0].mxu0
      %397 = vmatprep.mubr.f32.mxu0 0.0
      %398 = vmatmul.mubr.f32.gmra.mrb[0].mxu0 %v232
      %v399 = vpop.f32.mrb[0].mxu0
      %v400 = vadd.f32 %v225, %v399
      %v401 = vpop.f32.mrb[0].mxu0
      %402 = vmatprep.mubr.f32.mxu0 0.0
      %403 = vmatmul.mubr.f32.gmra.mrb[0].mxu0 %v235
      %v404 = vpop.f32.mrb[0].mxu0
      %v405 = vadd.f32 %v225, %v404
      %v406 = vpop.f32.mrb[0].mxu0
      %407 = vmatprep.mubr.f32.mxu0 0.0
      %408 = vmatmul.mubr.f32.gmra.mrb[0].mxu0 %v238
      %v409 = vpop.f32.mrb[0].mxu0
      %v410 = vadd.f32 %v225, %v409
      %v411 = vpop.f32.mrb[0].mxu0
      %412 = vmatprep.mubr.f32.mxu0 0.0
      %413 = vmatmul.mubr.f32.gmra.mrb[0].mxu0 %v241
      %v414 = vpop.f32.mrb[0].mxu0
      %v415 = vadd.f32 %v225, %v414
      %v416 = vpop.f32.mrb[0].mxu0
      %417 = vmatprep.mubr.f32.mxu0 0.0
      %418 = vmatmul.mubr.f32.gmra.mrb[0].mxu0 %v244
      %v419 = vpop.f32.mrb[0].mxu0
      %v420 = vadd.f32 %v225, %v419
      %v421 = vpop.f32.mrb[0].mxu0
      %422 = vmatprep.mubr.f32.mxu0 0.0
      %423 = vmatmul.mubr.f32.gmra.mrb[0].mxu0 %v247
      %v424 = vpop.f32.mrb[0].mxu0
      %v425 = vadd.f32 %v225, %v424
      %v426 = vpop.f32.mrb[0].mxu0
      %427 = vmatprep.mubr.f32.mxu0 0.0
      %428 = vmatmul.mubr.f32.gmra.mrb[0].mxu0 %v250
      %v429 = vpop.f32.mrb[0].mxu0
      %v430 = vadd.f32 %v225, %v429
      %v431 = vpop.f32.mrb[0].mxu0
      %432 = vmatprep.mubr.f32.mxu0 0.0
      %433 = vmatmul.mubr.f32.gmra.mrb[0].mxu0 %v253
      %v434 = vpop.f32.mrb[0].mxu0
      %v435 = vadd.f32 %v225, %v434
      %v436 = vpop.f32.mrb[0].mxu0
      %437 = vmatprep.mubr.f32.mxu0 0.0
      %438 = vmatmul.mubr.f32.gmra.mrb[0].mxu0 %v256
      %v439 = vpop.f32.mrb[0].mxu0
      %v440 = vadd.f32 %v225, %v439
      %v441 = vpop.f32.mrb[0].mxu0
      %442 = vmatprep.mubr.f32.mxu0 0.0
      %443 = vmatmul.mubr.f32.gmra.mrb[0].mxu0 %v259
      %v444 = vpop.f32.mrb[0].mxu0
      %v445 = vadd.f32 %v225, %v444
      %v446 = vpop.f32.mrb[0].mxu0
      %447 = vmatprep.mubr.f32.mxu0 0.0
      %448 = vmatmul.mubr.f32.gmra.mrb[0].mxu0 %v262
      %v449 = vpop.f32.mrb[0].mxu0
      %v450 = vadd.f32 %v225, %v449
      %v451 = vpop.f32.mrb[0].mxu0
      %452 = vmatprep.mubr.f32.mxu0 0.0
      %453 = vmatmul.mubr.f32.gmra.mrb[0].mxu0 %v265
      %v454 = vpop.f32.mrb[0].mxu0
      %v455 = vadd.f32 %v225, %v454
      %v456 = vpop.f32.mrb[0].mxu0
      %457 = vmatprep.mubr.f32.mxu0 0.0
      %458 = vmatmul.mubr.f32.gmra.mrb[0].mxu0 %v268
      %v459 = vpop.f32.mrb[0].mxu0
      %v460 = vadd.f32 %v225, %v459
      %v461 = vpop.f32.mrb[0].mxu0
      %462 = vmatprep.mubr.f32.mxu0 0.0
      %463 = vmatmul.mubr.f32.gmra.mrb[0].mxu0 %v271
      %v464 = vpop.f32.mrb[0].mxu0
      %v465 = vadd.f32 %v225, %v464
      %v466 = vpop.f32.mrb[0].mxu0
      %467 = vmatprep.mubr.f32.mxu0 0.0
      %468 = vmatmul.mubr.f32.gmra.mrb[0].mxu0 %v274
      %v469 = vpop.f32.mrb[0].mxu0
      %v470 = vadd.f32 %v225, %v469
      %v471 = vpop.f32.mrb[0].mxu0
      %472 = vmatprep.mubr.f32.mxu0 0.0
      %473 = vmatmul.mubr.f32.gmra.mrb[0].mxu0 %v277
      %v474 = vpop.f32.mrb[0].mxu0
      %v475 = vadd.f32 %v225, %v474
      %v476 = vpop.f32.mrb[0].mxu0
      %477 = vmatprep.mubr.f32.mxu0 0.0
      %478 = vmatmul.mubr.f32.gmra.mrb[0].mxu0 %v280
      %v479 = vpop.f32.mrb[0].mxu0
      %v480 = vadd.f32 %v225, %v479
      %v481 = vpop.f32.mrb[0].mxu0
      %482 = vmatprep.mubr.f32.mxu0 0.0
      %483 = vmatmul.mubr.f32.gmra.mrb[0].mxu0 %v283
      %v484 = vpop.f32.mrb[0].mxu0
      %v485 = vadd.f32 %v225, %v484
      %v486 = vpop.f32.mrb[0].mxu0
      %487 = vmatprep.mubr.f32.mxu0 0.0
      %488 = vmatmul.mubr.f32.gmra.mrb[0].mxu0 %v286
      %v489 = vpop.f32.mrb[0].mxu0
      %v490 = vadd.f32 %v225, %v489
      %v491 = vpop.f32.mrb[0].mxu0
      %492 = vmatprep.mubr.f32.mxu0 0.0
      %493 = vmatmul.mubr.f32.gmra.mrb[0].mxu0 %v289
      %v494 = vpop.f32.mrb[0].mxu0
      %v495 = vadd.f32 %v225, %v494
      %v496 = vpop.f32.mrb[0].mxu0
      %497 = vmatprep.mubr.f32.mxu0 0.0
      %498 = vmatmul.mubr.f32.gmra.mrb[0].mxu0 %v292
      %v499 = vpop.f32.mrb[0].mxu0
      %v500 = vadd.f32 %v225, %v499
      %v501 = vpop.f32.mrb[0].mxu0
      %502 = vmatprep.mubr.f32.mxu0 0.0
      %503 = vmatmul.mubr.f32.gmra.mrb[0].mxu0 %v295
      %v504 = vpop.f32.mrb[0].mxu0
      %v505 = vadd.f32 %v225, %v504
      %v506 = vpop.f32.mrb[0].mxu0
      %507 = vmatprep.mubr.f32.mxu0 0.0
      %508 = vmatmul.mubr.f32.gmra.mrb[0].mxu0 %v298
      %v509 = vpop.f32.mrb[0].mxu0
      %v510 = vadd.f32 %v225, %v509
      %v511 = vpop.f32.mrb[0].mxu0
      %512 = vmatprep.mubr.f32.mxu0 0.0
      %513 = vmatmul.mubr.f32.gmra.mrb[0].mxu0 %v301
      %v514 = vpop.f32.mrb[0].mxu0
      %v515 = vadd.f32 %v225, %v514
      %v516 = vpop.f32.mrb[0].mxu0
      %517 = vmatprep.mubr.f32.mxu0 0.0
      %518 = vmatmul.mubr.f32.gmra.mrb[0].mxu0 %v304
      %v519 = vpop.f32.mrb[0].mxu0
      %v520 = vadd.f32 %v225, %v519
      %v521 = vpop.f32.mrb[0].mxu0
      %522 = vmatprep.mubr.f32.mxu0 0.0
      %523 = vmatmul.mubr.f32.gmra.mrb[0].mxu0 %v307
      %v524 = vpop.f32.mrb[0].mxu0
      %v525 = vadd.f32 %v225, %v524
      %v526 = vpop.f32.mrb[0].mxu0
      %527 = vmatprep.mubr.f32.mxu0 0.0
      %528 = vmatmul.mubr.f32.gmra.mrb[0].mxu0 %v310
      %v529 = vpop.f32.mrb[0].mxu0
      %v530 = vadd.f32 %v225, %v529
      %v531 = vpop.f32.mrb[0].mxu0
      %532 = vmatprep.mubr.f32.mxu0 0.0
      %533 = vmatmul.mubr.f32.gmra.mrb[0].mxu0 %v313
      %v534 = vpop.f32.mrb[0].mxu0
      %v535 = vadd.f32 %v225, %v534
      %v536 = vpop.f32.mrb[0].mxu0
      %537 = vmatprep.mubr.f32.mxu0 0.0
      %538 = vmatmul.mubr.f32.gmra.mrb[0].mxu0 %v316
      %v539 = vpop.f32.mrb[0].mxu0
      %v540 = vadd.f32 %v225, %v539
      %v541 = vpop.f32.mrb[0].mxu0
      %542 = vmatprep.mubr.f32.mxu0 0.0
      %543 = vmatmul.mubr.f32.gmra.mrb[0].mxu0 %v319
      %v544 = vpop.f32.mrb[0].mxu0
      %v545 = vadd.f32 %v225, %v544
      %v546 = vpop.f32.mrb[0].mxu0
      %547 = vmatprep.mubr.f32.mxu0 0.0
      %548 = vmatmul.mubr.f32.gmra.mrb[0].mxu0 %v322
      %v549 = vpop.f32.mrb[0].mxu0
      %v550 = vadd.f32 %v225, %v549
      %v551 = vpop.f32.mrb[0].mxu0
      %552 = vdwg.mxu0
      %vm553 = vcmask 64512
      %554 = vst.msk [vmem:[%s172] sm:$0xff] %vm553, %v395
      %555 = vst.msk [vmem:[%s172 + $0x8] sm:$0xff] %vm553, %v400
      %556 = vst.msk [vmem:[%s172 + $0x10] sm:$0xff] %vm553, %v405
      %557 = vst.msk [vmem:[%s172 + $0x18] sm:$0xff] %vm553, %v410
      %558 = vst.msk [vmem:[%s172 + $0x20] sm:$0xff] %vm553, %v415
      %559 = vst.msk [vmem:[%s172 + $0x28] sm:$0xff] %vm553, %v420
      %560 = vst.msk [vmem:[%s172 + $0x30] sm:$0xff] %vm553, %v425
      %561 = vst.msk [vmem:[%s172 + $0x38] sm:$0xff] %vm553, %v430
      %562 = vst.msk [vmem:[%s172 + $0x40] sm:$0xff] %vm553, %v435
      %563 = vst.msk [vmem:[%s172 + $0x48] sm:$0xff] %vm553, %v440
      %564 = vst.msk [vmem:[%s172 + $0x50] sm:$0xff] %vm553, %v445
      %565 = vst.msk [vmem:[%s172 + $0x58] sm:$0xff] %vm553, %v450
      %566 = vst.msk [vmem:[%s172 + $0x60] sm:$0xff] %vm553, %v455
      %567 = vst.msk [vmem:[%s172 + $0x68] sm:$0xff] %vm553, %v460
      %568 = vst.msk [vmem:[%s172 + $0x70] sm:$0xff] %vm553, %v465
      %569 = vst.msk [vmem:[%s172 + $0x78] sm:$0xff] %vm553, %v470
      %570 = vst.msk [vmem:[%s172 + $0x80] sm:$0xff] %vm553, %v475
      %571 = vst.msk [vmem:[%s172 + $0x88] sm:$0xff] %vm553, %v480
      %572 = vst.msk [vmem:[%s172 + $0x90] sm:$0xff] %vm553, %v485
      %573 = vst.msk [vmem:[%s172 + $0x98] sm:$0xff] %vm553, %v490
      %574 = vst.msk [vmem:[%s172 + $0xa0] sm:$0xff] %vm553, %v495
      %575 = vst.msk [vmem:[%s172 + $0xa8] sm:$0xff] %vm553, %v500
      %576 = vst.msk [vmem:[%s172 + $0xb0] sm:$0xff] %vm553, %v505
      %577 = vst.msk [vmem:[%s172 + $0xb8] sm:$0xff] %vm553, %v510
      %578 = vst.msk [vmem:[%s172 + $0xc0] sm:$0xff] %vm553, %v515
      %579 = vst.msk [vmem:[%s172 + $0xc8] sm:$0xff] %vm553, %v520
      %580 = vst.msk [vmem:[%s172 + $0xd0] sm:$0xff] %vm553, %v525
      %581 = vst.msk [vmem:[%s172 + $0xd8] sm:$0xff] %vm553, %v530
      %582 = vst.msk [vmem:[%s172 + $0xe0] sm:$0xff] %vm553, %v535
      %583 = vst.msk [vmem:[%s172 + $0xe8] sm:$0xff] %vm553, %v540
      %584 = vst.msk [vmem:[%s172 + $0xf0] sm:$0xff] %vm553, %v545
      %585 = vst.msk [vmem:[%s172 + $0xf8] sm:$0xff] %vm553, %v550
      %s586 = smul.u32 32, %s14
      %p587 = scmp.lt.s32.totalorder %s586, 255
      %s588 = scalar_select %p587, %s586, 255
      %s589 = smul.addr %s588, 8
      %s590 = scalar_lea.vmem %s3, %s589
      // Predicated region
      $region33: #{decoder_block_forward.3} parent=31 // pred_check
        %p591 = pneg %p100
      $region34: #{decoder_block_forward.3} parent=31 // pred_check_branch
        %593 = sbr.rel (%p591) target = $region36
      $region35: #{decoder_block_forward.3} parent=31 // pred_region
        %s594 = smul.u32 32, %s14
      $region36: #{decoder_block_forward.3} parent=31 // pred_fallthru
        _
    $region32: #{decoder_block_forward.3} parent=5 // pred_fallthru
      _
    %p595 = scmp.le.s32.totalorder 2, %s9
    // Predicated region
    $region37: #{decoder_block_forward.3} parent=5 // pred_check
      %p596 = pneg %p595
    $region38: #{decoder_block_forward.3} parent=5 // pred_check_branch
      %598 = sbr.rel (%p596) target = $region40
    $region39: #{decoder_block_forward.3} parent=5 // pred_region
      %s599 = ssub.s32 %s9, 2
      // Predicated region
      $region41: #{decoder_block_forward.3} parent=39 // pred_check
        %p600 = pneg %p106
      $region42: #{decoder_block_forward.3} parent=39 // pred_check_branch
        %602 = sbr.rel (%p600) target = $region44
      $region43: #{decoder_block_forward.3} parent=39 // pred_region
        %s603 = smul.u32 32, %s15
        %p604 = scmp.lt.s32.totalorder %s603, 255
        %s605 = scalar_select %p604, %s603, 255
        %s606 = smul.addr %s605, 8
        %s607 = scalar_lea.vmem %s3, %s606
      $region44: #{decoder_block_forward.3} parent=39 // pred_fallthru
        _
    $region40: #{decoder_block_forward.3} parent=5 // pred_fallthru
      _
  $region6: #{decoder_block_forward.3} parent=0 // loop_footer
    %s13 = sadd.s32 1, %s9
  $region7: #{decoder_block_forward.3} parent=0 // loop_footer_branch
    %8 = sbr.rel target = $region3
  $region8: #{decoder_block_forward.3} parent=0 // loop_exit
    _

</llo_original>
